<compile_context>
chip_gen: v7x
topology: tpu7x:2x2x1
jax: 0.10.0
libtpu: 0.0.40
codegen_flags: <defaults>
</compile_context>

<pallas_src>
import jax
import jax.numpy as jnp
from jax.experimental import pallas as pl
from jax.experimental.pallas import tpu as pltpu


def mlp_kernel(xT_ref, w1c_ref, b1_ref, w2c_ref, b2_ref, o_ref):
    # xT_ref : (in_dim, TB)     activations, batch on lanes (lane-dense)
    # w1c_ref: (in_dim, mid, 1) columns of layer1 weight, w1c[k] == W1[:, k]
    # b1_ref : (mid, 1)
    # w2c_ref: (mid, 1)         layer2 weight as a column (out_dim == 1)
    # b2_ref : (1, 1)           scalar bias in SMEM
    # o_ref  : (1, TB)          lane-dense output block
    in_dim = xT_ref.shape[0]
    mid = b1_ref.shape[0]
    tb = xT_ref.shape[1]

    xT = xT_ref[...]

    # layer 1 (VPU only): h[m, b] = b1[m] + sum_k W1[m, k] * x[b, k]
    h = jnp.broadcast_to(b1_ref[...], (mid, tb))
    for k in range(in_dim):  # static unroll, in_dim is tiny
        h = h + w1c_ref[k] * xT[k:k + 1, :]

    # step activation: x <= 0 -> -1, x > 0 -> +1  (matches PyTorch module)
    h_sign = jnp.where(h > 0.0, 1.0, -1.0)

    # layer 2: VPU multiply + cross-sublane (XLU) reduce; result stays lane-dense
    y = jnp.sum(w2c_ref[...] * h_sign, axis=0, keepdims=True)  # (1, TB)
    o_ref[...] = y + b2_ref[0, 0]


def mlp_forward(x, w1, b1, w2, b2, *, block_b=256):
    """x: (B, in_dim) f32. Weights/biases in PyTorch Linear layout:
    w1: (mid, in), b1: (mid,), w2: (out, mid), b2: (out,). Returns (B, out)."""
    B, in_dim = x.shape
    mid = w1.shape[0]
    out_dim = w2.shape[0]
    assert out_dim == 1, "module spec has out_dimension=1 (forward returns int(x))"

    tb = block_b
    b_pad = pl.cdiv(B, tb) * tb

    # wrapper-side layout plumbing (not compute)
    xT = jnp.asarray(x, jnp.float32).T                              # (in_dim, B)
    if b_pad != B:
        xT = jnp.pad(xT, ((0, 0), (0, b_pad - B)))
    w1c = jnp.asarray(w1, jnp.float32).T.reshape(in_dim, mid, 1)    # W1[:, k] columns
    b1c = jnp.asarray(b1, jnp.float32).reshape(mid, 1)
    w2c = jnp.asarray(w2, jnp.float32).reshape(mid, 1)
    b2s = jnp.asarray(b2, jnp.float32).reshape(1, 1)

    flops = 2 * b_pad * mid * (in_dim + out_dim)
    bytes_accessed = 4 * (in_dim * b_pad + in_dim * mid + 2 * mid + 1 + b_pad)

    out_t = pl.pallas_call(
        mlp_kernel,
        out_shape=jax.ShapeDtypeStruct((1, b_pad), jnp.float32),
        grid=(b_pad // tb,),
        in_specs=[
            pl.BlockSpec((in_dim, tb), lambda i: (0, i)),          # activations
            pl.BlockSpec((in_dim, mid, 1), lambda i: (0, 0, 0)),   # W1 columns
            pl.BlockSpec((mid, 1), lambda i: (0, 0)),              # b1
            pl.BlockSpec((mid, 1), lambda i: (0, 0)),              # W2 column
            pl.BlockSpec(memory_space=pltpu.MemorySpace.SMEM),     # b2 scalar
        ],
        out_specs=pl.BlockSpec((1, tb), lambda i: (0, i)),
        compiler_params=pltpu.CompilerParams(
            dimension_semantics=("parallel",)),
        cost_estimate=pl.CostEstimate(
            flops=flops, transcendentals=0, bytes_accessed=bytes_accessed),
    )(xT, w1c, b1c, w2c, b2s)

    return out_t[0, :B].reshape(B, out_dim)


def init_params(key, in_dim, mid_dim, out_dim=1):
    # PyTorch Linear default init: U(-1/sqrt(fan_in), 1/sqrt(fan_in)),
    # reproduced deterministically with JAX PRNG, in PyTorch layouts.
    k1, k2, k3, k4 = jax.random.split(key, 4)
    bound1 = 1.0 / jnp.sqrt(jnp.float32(in_dim))
    bound2 = 1.0 / jnp.sqrt(jnp.float32(mid_dim))
    w1 = jax.random.uniform(k1, (mid_dim, in_dim), jnp.float32, -bound1, bound1)
    b1 = jax.random.uniform(k2, (mid_dim,), jnp.float32, -bound1, bound1)
    w2 = jax.random.uniform(k3, (out_dim, mid_dim), jnp.float32, -bound2, bound2)
    b2 = jax.random.uniform(k4, (out_dim,), jnp.float32, -bound2, bound2)
    return w1, b1, w2, b2


if __name__ == "__main__":
    in_dim, mid_dim, out_dim = 8, 32, 1
    batch = 512  # many samples per call: the workload is launch-overhead bound

    key = jax.random.PRNGKey(0)
    kx, kp = jax.random.split(key)
    x = jax.random.normal(kx, (batch, in_dim), jnp.float32)
    w1, b1, w2, b2 = init_params(kp, in_dim, mid_dim, out_dim)

    out = mlp_forward(x, w1, b1, w2, b2)
    out = jax.block_until_ready(out)

    # pure-JAX reference (PyTorch semantics: x <= 0 -> -1, x > 0 -> +1)
    h_ref = x @ w1.T + b1
    h_ref = jnp.where(h_ref > 0.0, 1.0, -1.0)
    y_ref = h_ref @ w2.T + b2
    assert out.shape == (batch, out_dim)
    assert jnp.allclose(out, y_ref, atol=1e-5), (out[:4], y_ref[:4])

    # The module's forward() returns int(x) for a single sample; that final
    # Python-int cast is a host-side scalar cast, shown here for sample 0.
    result_int = int(out[0, 0])
    print("KERNEL_OK")
</pallas_src>

<mosaic_0001>
module attributes {stable_mosaic.version = 11 : i64} {
  func.func @mlp_kernel(%arg0: i32, %arg1: memref<8x256xf32, #tpu.memory_space<vmem>>, %arg2: memref<8x32x1xf32, #tpu.memory_space<vmem>>, %arg3: memref<32x1xf32, #tpu.memory_space<vmem>>, %arg4: memref<32x1xf32, #tpu.memory_space<vmem>>, %arg5: memref<1x1xf32, #tpu.memory_space<smem>>, %arg6: memref<1x256xf32, #tpu.memory_space<vmem>>) attributes {dimension_semantics = [#tpu.dimension_semantics<parallel>], iteration_bounds = array<i64: 2>, scalar_prefetch = 0 : i64, scratch_operands = 0 : i64, tpu.core_type = #tpu.core_type<tc>, window_params = [{transform_indices = @transform_0, window_bounds = array<i64: 8, 256>}, {pipeline_mode = #tpu.pipeline_mode<synchronous>, transform_indices = @transform_1, window_bounds = array<i64: 8, 32, 1>}, {pipeline_mode = #tpu.pipeline_mode<synchronous>, transform_indices = @transform_2, window_bounds = array<i64: 32, 1>}, {pipeline_mode = #tpu.pipeline_mode<synchronous>, transform_indices = @transform_3, window_bounds = array<i64: 32, 1>}, {transform_indices = @transform_4, window_bounds = array<i64: 1, 1>}, {transform_indices = @transform_5, window_bounds = array<i64: 1, 256>}]} {
    %c0 = arith.constant 0 : index
    %c0_0 = arith.constant 0 : index
    %0 = vector.load %arg1[%c0, %c0_0] : memref<8x256xf32, #tpu.memory_space<vmem>>, vector<8x256xf32>
    %c0_1 = arith.constant 0 : index
    %c0_2 = arith.constant 0 : index
    %1 = vector.load %arg3[%c0_1, %c0_2] : memref<32x1xf32, #tpu.memory_space<vmem>>, vector<32x1xf32>
    %2 = vector.shape_cast %1 : vector<32x1xf32> to vector<32x1xf32>
    %3 = vector.broadcast %2 : vector<32x1xf32> to vector<32x256xf32>
    %c0_3 = arith.constant 0 : index
    %c0_4 = arith.constant 0 : index
    %c0_5 = arith.constant 0 : index
    %4 = vector.load %arg2[%c0_3, %c0_4, %c0_5] : memref<8x32x1xf32, #tpu.memory_space<vmem>>, vector<1x32x1xf32>
    %5 = vector.shape_cast %4 : vector<1x32x1xf32> to vector<32x1xf32>
    %6 = vector.extract_strided_slice %0 {offsets = [0, 0], sizes = [1, 256], strides = [1, 1]} : vector<8x256xf32> to vector<1x256xf32>
    %7 = vector.broadcast %5 : vector<32x1xf32> to vector<32x256xf32>
    %8 = vector.broadcast %6 : vector<1x256xf32> to vector<32x256xf32>
    %9 = arith.mulf %7, %8 : vector<32x256xf32>
    %10 = arith.addf %3, %9 : vector<32x256xf32>
    %c1 = arith.constant 1 : index
    %c0_6 = arith.constant 0 : index
    %c0_7 = arith.constant 0 : index
    %11 = vector.load %arg2[%c1, %c0_6, %c0_7] : memref<8x32x1xf32, #tpu.memory_space<vmem>>, vector<1x32x1xf32>
    %12 = vector.shape_cast %11 : vector<1x32x1xf32> to vector<32x1xf32>
    %13 = vector.extract_strided_slice %0 {offsets = [1, 0], sizes = [1, 256], strides = [1, 1]} : vector<8x256xf32> to vector<1x256xf32>
    %14 = vector.broadcast %12 : vector<32x1xf32> to vector<32x256xf32>
    %15 = vector.broadcast %13 : vector<1x256xf32> to vector<32x256xf32>
    %16 = arith.mulf %14, %15 : vector<32x256xf32>
    %17 = arith.addf %10, %16 : vector<32x256xf32>
    %c2 = arith.constant 2 : index
    %c0_8 = arith.constant 0 : index
    %c0_9 = arith.constant 0 : index
    %18 = vector.load %arg2[%c2, %c0_8, %c0_9] : memref<8x32x1xf32, #tpu.memory_space<vmem>>, vector<1x32x1xf32>
    %19 = vector.shape_cast %18 : vector<1x32x1xf32> to vector<32x1xf32>
    %20 = vector.extract_strided_slice %0 {offsets = [2, 0], sizes = [1, 256], strides = [1, 1]} : vector<8x256xf32> to vector<1x256xf32>
    %21 = vector.broadcast %19 : vector<32x1xf32> to vector<32x256xf32>
    %22 = vector.broadcast %20 : vector<1x256xf32> to vector<32x256xf32>
    %23 = arith.mulf %21, %22 : vector<32x256xf32>
    %24 = arith.addf %17, %23 : vector<32x256xf32>
    %c3 = arith.constant 3 : index
    %c0_10 = arith.constant 0 : index
    %c0_11 = arith.constant 0 : index
    %25 = vector.load %arg2[%c3, %c0_10, %c0_11] : memref<8x32x1xf32, #tpu.memory_space<vmem>>, vector<1x32x1xf32>
    %26 = vector.shape_cast %25 : vector<1x32x1xf32> to vector<32x1xf32>
    %27 = vector.extract_strided_slice %0 {offsets = [3, 0], sizes = [1, 256], strides = [1, 1]} : vector<8x256xf32> to vector<1x256xf32>
    %28 = vector.broadcast %26 : vector<32x1xf32> to vector<32x256xf32>
    %29 = vector.broadcast %27 : vector<1x256xf32> to vector<32x256xf32>
    %30 = arith.mulf %28, %29 : vector<32x256xf32>
    %31 = arith.addf %24, %30 : vector<32x256xf32>
    %c4 = arith.constant 4 : index
    %c0_12 = arith.constant 0 : index
    %c0_13 = arith.constant 0 : index
    %32 = vector.load %arg2[%c4, %c0_12, %c0_13] : memref<8x32x1xf32, #tpu.memory_space<vmem>>, vector<1x32x1xf32>
    %33 = vector.shape_cast %32 : vector<1x32x1xf32> to vector<32x1xf32>
    %34 = vector.extract_strided_slice %0 {offsets = [4, 0], sizes = [1, 256], strides = [1, 1]} : vector<8x256xf32> to vector<1x256xf32>
    %35 = vector.broadcast %33 : vector<32x1xf32> to vector<32x256xf32>
    %36 = vector.broadcast %34 : vector<1x256xf32> to vector<32x256xf32>
    %37 = arith.mulf %35, %36 : vector<32x256xf32>
    %38 = arith.addf %31, %37 : vector<32x256xf32>
    %c5 = arith.constant 5 : index
    %c0_14 = arith.constant 0 : index
    %c0_15 = arith.constant 0 : index
    %39 = vector.load %arg2[%c5, %c0_14, %c0_15] : memref<8x32x1xf32, #tpu.memory_space<vmem>>, vector<1x32x1xf32>
    %40 = vector.shape_cast %39 : vector<1x32x1xf32> to vector<32x1xf32>
    %41 = vector.extract_strided_slice %0 {offsets = [5, 0], sizes = [1, 256], strides = [1, 1]} : vector<8x256xf32> to vector<1x256xf32>
    %42 = vector.broadcast %40 : vector<32x1xf32> to vector<32x256xf32>
    %43 = vector.broadcast %41 : vector<1x256xf32> to vector<32x256xf32>
    %44 = arith.mulf %42, %43 : vector<32x256xf32>
    %45 = arith.addf %38, %44 : vector<32x256xf32>
    %c6 = arith.constant 6 : index
    %c0_16 = arith.constant 0 : index
    %c0_17 = arith.constant 0 : index
    %46 = vector.load %arg2[%c6, %c0_16, %c0_17] : memref<8x32x1xf32, #tpu.memory_space<vmem>>, vector<1x32x1xf32>
    %47 = vector.shape_cast %46 : vector<1x32x1xf32> to vector<32x1xf32>
    %48 = vector.extract_strided_slice %0 {offsets = [6, 0], sizes = [1, 256], strides = [1, 1]} : vector<8x256xf32> to vector<1x256xf32>
    %49 = vector.broadcast %47 : vector<32x1xf32> to vector<32x256xf32>
    %50 = vector.broadcast %48 : vector<1x256xf32> to vector<32x256xf32>
    %51 = arith.mulf %49, %50 : vector<32x256xf32>
    %52 = arith.addf %45, %51 : vector<32x256xf32>
    %c7 = arith.constant 7 : index
    %c0_18 = arith.constant 0 : index
    %c0_19 = arith.constant 0 : index
    %53 = vector.load %arg2[%c7, %c0_18, %c0_19] : memref<8x32x1xf32, #tpu.memory_space<vmem>>, vector<1x32x1xf32>
    %54 = vector.shape_cast %53 : vector<1x32x1xf32> to vector<32x1xf32>
    %55 = vector.extract_strided_slice %0 {offsets = [7, 0], sizes = [1, 256], strides = [1, 1]} : vector<8x256xf32> to vector<1x256xf32>
    %56 = vector.broadcast %54 : vector<32x1xf32> to vector<32x256xf32>
    %57 = vector.broadcast %55 : vector<1x256xf32> to vector<32x256xf32>
    %58 = arith.mulf %56, %57 : vector<32x256xf32>
    %59 = arith.addf %52, %58 : vector<32x256xf32>
    %cst = arith.constant 0.000000e+00 : f32
    %60 = vector.broadcast %cst : f32 to vector<32x256xf32>
    %61 = arith.cmpf ogt, %59, %60 : vector<32x256xf32>
    %cst_20 = arith.constant 1.000000e+00 : f32
    %cst_21 = arith.constant -1.000000e+00 : f32
    %62 = vector.broadcast %cst_20 : f32 to vector<32x256xf32>
    %63 = vector.broadcast %cst_21 : f32 to vector<32x256xf32>
    %64 = arith.select %61, %62, %63 : vector<32x256xi1>, vector<32x256xf32>
    %c0_22 = arith.constant 0 : index
    %c0_23 = arith.constant 0 : index
    %65 = vector.load %arg4[%c0_22, %c0_23] : memref<32x1xf32, #tpu.memory_space<vmem>>, vector<32x1xf32>
    %66 = vector.broadcast %65 : vector<32x1xf32> to vector<32x256xf32>
    %67 = arith.mulf %66, %64 : vector<32x256xf32>
    %cst_24 = arith.constant dense<0.000000e+00> : vector<256xf32>
    %68 = vector.multi_reduction <add>, %67, %cst_24 [0] : vector<32x256xf32> to vector<256xf32>
    %69 = vector.shape_cast %68 : vector<256xf32> to vector<1x256xf32>
    %c0_25 = arith.constant 0 : index
    %c0_26 = arith.constant 0 : index
    %70 = memref.load %arg5[%c0_25, %c0_26] : memref<1x1xf32, #tpu.memory_space<smem>>
    %71 = vector.broadcast %70 : f32 to vector<1x256xf32>
    %72 = arith.addf %69, %71 : vector<1x256xf32>
    %c0_27 = arith.constant 0 : index
    %c0_28 = arith.constant 0 : index
    %73 = vector.load %arg6[%c0_27, %c0_28] : memref<1x256xf32, #tpu.memory_space<vmem>>, vector<1x256xf32>
    tpu.vector_store %arg6[%c0_27, %c0_28], %72 {strides = array<i32>} : memref<1x256xf32, #tpu.memory_space<vmem>>, vector<1x256xf32>,
    return
  }
  func.func @transform_0(%arg0: i32) -> (i32, i32) {
    %c0_i32 = arith.constant 0 : i32
    %c0_i32_0 = arith.constant 0 : i32
    return %c0_i32, %arg0 : i32, i32
  }
  func.func @transform_1(%arg0: i32) -> (i32, i32, i32) {
    %c0_i32 = arith.constant 0 : i32
    %c0_i32_0 = arith.constant 0 : i32
    %c0_i32_1 = arith.constant 0 : i32
    %c0_i32_2 = arith.constant 0 : i32
    return %c0_i32, %c0_i32_0, %c0_i32_1 : i32, i32, i32
  }
  func.func @transform_2(%arg0: i32) -> (i32, i32) {
    %c0_i32 = arith.constant 0 : i32
    %c0_i32_0 = arith.constant 0 : i32
    %c0_i32_1 = arith.constant 0 : i32
    return %c0_i32, %c0_i32_0 : i32, i32
  }
  func.func @transform_3(%arg0: i32) -> (i32, i32) {
    %c0_i32 = arith.constant 0 : i32
    %c0_i32_0 = arith.constant 0 : i32
    %c0_i32_1 = arith.constant 0 : i32
    return %c0_i32, %c0_i32_0 : i32, i32
  }
  func.func @transform_4(%arg0: i32) -> (i32, i32) {
    %c0_i32 = arith.constant 0 : i32
    %c0_i32_0 = arith.constant 0 : i32
    %c0_i32_1 = arith.constant 0 : i32
    return %c0_i32, %c0_i32_0 : i32, i32
  }
  func.func @transform_5(%arg0: i32) -> (i32, i32) {
    %c0_i32 = arith.constant 0 : i32
    %c0_i32_0 = arith.constant 0 : i32
    return %c0_i32, %arg0 : i32, i32
  }
}

</mosaic_0001>

<llo_original>
// kernel: tpu_custom_call.1
$region0: #{tpu_custom_call.1}
  #allocation0 [shape = 'u32[]', space=smem, size = 0x4, offset = 0x4, fixed_abs, tag = 'smem constant byte address 0x4 - core index']
  #allocation1 [shape = 'u32[144,128]{1,0:T(1,128)}', space=vmem, size = 0x12000, scoped, tag = 'internal scratch']
  #allocation2 [shape = 'f32[1,1]{1,0:T(1,128)S(6)}', space=smem, size = 0x200, scoped, tag = 'scoped memory for tpu_custom_call.1']
  %s0 = inlined_call_operand.vmem [shape: f32[8,512], index: 0, kind: input, shape index: {}]
  %s1 = inlined_call_operand.vmem [shape: f32[8,32,1], index: 1, kind: input, shape index: {}]
  %s2 = inlined_call_operand.vmem [shape: f32[32,1], index: 2, kind: input, shape index: {}]
  %s3 = inlined_call_operand.vmem [shape: f32[32,1], index: 3, kind: input, shape index: {}]
  %s4 = inlined_call_operand.<no memory space> [shape: f32[1,1], index: 4, kind: input, shape index: {}]
  %s5 = inlined_call_operand.hbm [shape: f32[1,512], index: 5, kind: output, shape index: {}]
  %s6 = sld [smem:[#allocation0]]
  $region53: #{tpu_custom_call.1} parent=0
    _
  %s8 = ssub.s32 1, %s6
  %s9 = scalar_select 0, %s8, %s6
  %10 = sst [smem:[#allocation2]] %s4
  $region1: #{tpu_custom_call.1} parent=0
    #allocation3 [shape = 'u8[2048]{0}', space=vmem, size = 0x800, scoped, tag = 'output window, operand 0']
    #allocation4 [shape = 's32[2]{0}', space=sflag, size = 0x8, scoped, tag = 'scoped memory for tpu_custom_call.1']
    %11 = vsyncpa [#allocation4], 0
    %s12 = scalar_lea.sflag [#allocation4], 1
    %13 = vsyncpa %s12, 0
    loop: start=0, step=1, limit=4
    $region2: #{tpu_custom_call.1} parent=1 // loop_pre_header
      _
    $region3: #{tpu_custom_call.1} parent=1 // loop_header
      %s15 = sphi 0, %s19
      %p16 = scmp.ge.s32.totalorder %s15, 4
      %s25 = sphi 0, %s27
      %s28 = sphi 0, %s25
      %s29 = sphi 0, %s28
      %s45 = sphi 0, %s29
      %s49 = sphi 0, %s49
      %s51 = sphi 0, %s49
      %s52 = sphi 0, %s51
      %s66 = sphi 0, %s52
      %s70 = sphi 0, %s70
      %s72 = sphi 0, %s70
      %s73 = sphi 0, %s72
      %s87 = sphi 0, %s73
      %s91 = sphi 0, %s91
      %s93 = sphi 0, %s91
      %s94 = sphi 0, %s93
      %s108 = sphi 0, %s94
      %s112 = sphi 0, %s112
      %s114 = sphi 0, %s112
      %s115 = sphi 0, %s114
      %s129 = sphi 0, %s115
      %s135 = sphi 0, %s137
      %s138 = sphi 0, %s135
      %s139 = sphi 0, %s138
      %s155 = sphi 0, %s139
    $region4: #{tpu_custom_call.1} parent=1 // loop_header_branch
      %18 = sbr.rel (%p16) target = $region8
    $region5: #{tpu_custom_call.1} parent=1 // loop_body
      %s20 = ssub.s32 %s15, 1
      %s21 = ssub.s32 %s15, 2
      %s22 = sadd.s32 %s15, 1
      %s23 = ssub.s32 %s15, %s22
      %p24 = scmp.eq.s32.totalorder %s23, 0
      %s26 = sadd.s32 %s25, 1
      %s27 = scalar_select %p24, %s25, %s26
      %p30 = pneg %p24
      %p31 = scmp.eq.s32.totalorder %s15, 1
      %p32 = por %p30, %p31
      %p33 = scmp.ne.s32.totalorder %s25, %s28
      %p34 = scmp.eq.s32.totalorder %s15, 0
      %p35 = por %p33, %p34
      %p36 = scmp.ne.s32.totalorder %s25, %s28
      %p37 = scmp.eq.s32.totalorder %s20, 1
      %p38 = por %p36, %p37
      %p39 = scmp.ne.s32.totalorder %s28, %s29
      %p40 = scmp.eq.s32.totalorder %s20, 0
      %p41 = por %p39, %p40
      %p42 = scmp.ne.s32.totalorder %s28, %s29
      %p43 = scmp.eq.s32.totalorder %s21, 1
      %p44 = por %p42, %p43
      %p46 = scmp.ne.s32.totalorder %s29, %s45
      %p47 = scmp.eq.s32.totalorder %s21, 0
      %p48 = por %p46, %p47
      %s50 = sadd.s32 %s49, 1
      %p53 = scmp.eq.s32.totalorder %s15, 1
      %p54 = scmp.ne.s32.totalorder %s49, %s51
      %p55 = scmp.eq.s32.totalorder %s15, 0
      %p56 = por %p54, %p55
      %p57 = scmp.ne.s32.totalorder %s49, %s51
      %p58 = scmp.eq.s32.totalorder %s20, 1
      %p59 = por %p57, %p58
      %p60 = scmp.ne.s32.totalorder %s51, %s52
      %p61 = scmp.eq.s32.totalorder %s20, 0
      %p62 = por %p60, %p61
      %p63 = scmp.ne.s32.totalorder %s51, %s52
      %p64 = scmp.eq.s32.totalorder %s21, 1
      %p65 = por %p63, %p64
      %p67 = scmp.ne.s32.totalorder %s52, %s66
      %p68 = scmp.eq.s32.totalorder %s21, 0
      %p69 = por %p67, %p68
      %s71 = sadd.s32 %s70, 1
      %p74 = scmp.eq.s32.totalorder %s15, 1
      %p75 = scmp.ne.s32.totalorder %s70, %s72
      %p76 = scmp.eq.s32.totalorder %s15, 0
      %p77 = por %p75, %p76
      %p78 = scmp.ne.s32.totalorder %s70, %s72
      %p79 = scmp.eq.s32.totalorder %s20, 1
      %p80 = por %p78, %p79
      %p81 = scmp.ne.s32.totalorder %s72, %s73
      %p82 = scmp.eq.s32.totalorder %s20, 0
      %p83 = por %p81, %p82
      %p84 = scmp.ne.s32.totalorder %s72, %s73
      %p85 = scmp.eq.s32.totalorder %s21, 1
      %p86 = por %p84, %p85
      %p88 = scmp.ne.s32.totalorder %s73, %s87
      %p89 = scmp.eq.s32.totalorder %s21, 0
      %p90 = por %p88, %p89
      %s92 = sadd.s32 %s91, 1
      %p95 = scmp.eq.s32.totalorder %s15, 1
      %p96 = scmp.ne.s32.totalorder %s91, %s93
      %p97 = scmp.eq.s32.totalorder %s15, 0
      %p98 = por %p96, %p97
      %p99 = scmp.ne.s32.totalorder %s91, %s93
      %p100 = scmp.eq.s32.totalorder %s20, 1
      %p101 = por %p99, %p100
      %p102 = scmp.ne.s32.totalorder %s93, %s94
      %p103 = scmp.eq.s32.totalorder %s20, 0
      %p104 = por %p102, %p103
      %p105 = scmp.ne.s32.totalorder %s93, %s94
      %p106 = scmp.eq.s32.totalorder %s21, 1
      %p107 = por %p105, %p106
      %p109 = scmp.ne.s32.totalorder %s94, %s108
      %p110 = scmp.eq.s32.totalorder %s21, 0
      %p111 = por %p109, %p110
      %s113 = sadd.s32 %s112, 1
      %p116 = scmp.eq.s32.totalorder %s15, 1
      %p117 = scmp.ne.s32.totalorder %s112, %s114
      %p118 = scmp.eq.s32.totalorder %s15, 0
      %p119 = por %p117, %p118
      %p120 = scmp.ne.s32.totalorder %s112, %s114
      %p121 = scmp.eq.s32.totalorder %s20, 1
      %p122 = por %p120, %p121
      %p123 = scmp.ne.s32.totalorder %s114, %s115
      %p124 = scmp.eq.s32.totalorder %s20, 0
      %p125 = por %p123, %p124
      %p126 = scmp.ne.s32.totalorder %s114, %s115
      %p127 = scmp.eq.s32.totalorder %s21, 1
      %p128 = por %p126, %p127
      %p130 = scmp.ne.s32.totalorder %s115, %s129
      %p131 = scmp.eq.s32.totalorder %s21, 0
      %p132 = por %p130, %p131
      %s133 = ssub.s32 %s15, %s22
      %p134 = scmp.eq.s32.totalorder %s133, 0
      %s136 = sadd.s32 %s135, 1
      %s137 = scalar_select %p134, %s135, %s136
      %p140 = pneg %p134
      %p141 = scmp.eq.s32.totalorder %s15, 1
      %p142 = por %p140, %p141
      %p143 = scmp.ne.s32.totalorder %s135, %s138
      %p144 = scmp.eq.s32.totalorder %s15, 0
      %p145 = por %p143, %p144
      %p146 = scmp.ne.s32.totalorder %s135, %s138
      %p147 = scmp.eq.s32.totalorder %s20, 1
      %p148 = por %p146, %p147
      %p149 = scmp.ne.s32.totalorder %s138, %s139
      %p150 = scmp.eq.s32.totalorder %s20, 0
      %p151 = por %p149, %p150
      %p152 = scmp.ne.s32.totalorder %s138, %s139
      %p153 = scmp.eq.s32.totalorder %s21, 1
      %p154 = por %p152, %p153
      %p156 = scmp.ne.s32.totalorder %s139, %s155
      %p157 = scmp.eq.s32.totalorder %s21, 0
      %p158 = por %p156, %p157
      %p159 = scmp.le.s32.totalorder 1, %s15
      %p160 = scmp.lt.s32.totalorder %s15, 3
      %p161 = pnand %p159, %p160
      %p162 = pneg %p161
      // Predicated region
      $region9: #{tpu_custom_call.1} parent=5 // pred_check
        _
      $region10: #{tpu_custom_call.1} parent=5 // pred_check_branch
        %164 = sbr.rel (%p161) target = $region12
      $region11: #{tpu_custom_call.1} parent=5 // pred_region
        %s165 = ssub.s32 %s15, 1
        // Predicated region
        $region13: #{tpu_custom_call.1} parent=11 // pred_check
          %p166 = pneg %p62
        $region14: #{tpu_custom_call.1} parent=11 // pred_check_branch
          %168 = sbr.rel (%p166) target = $region16
        $region15: #{tpu_custom_call.1} parent=11 // pred_region
          _
        $region16: #{tpu_custom_call.1} parent=11 // pred_fallthru
          _
        // Predicated region
        $region17: #{tpu_custom_call.1} parent=11 // pred_check
          %p169 = pneg %p83
        $region18: #{tpu_custom_call.1} parent=11 // pred_check_branch
          %171 = sbr.rel (%p169) target = $region20
        $region19: #{tpu_custom_call.1} parent=11 // pred_region
          _
        $region20: #{tpu_custom_call.1} parent=11 // pred_fallthru
          _
        // Predicated region
        $region21: #{tpu_custom_call.1} parent=11 // pred_check
          %p172 = pneg %p104
        $region22: #{tpu_custom_call.1} parent=11 // pred_check_branch
          %174 = sbr.rel (%p172) target = $region24
        $region23: #{tpu_custom_call.1} parent=11 // pred_region
          _
        $region24: #{tpu_custom_call.1} parent=11 // pred_fallthru
          _
        // Predicated region
        $region25: #{tpu_custom_call.1} parent=11 // pred_check
          %p175 = pneg %p125
        $region26: #{tpu_custom_call.1} parent=11 // pred_check_branch
          %177 = sbr.rel (%p175) target = $region28
        $region27: #{tpu_custom_call.1} parent=11 // pred_region
          _
        $region28: #{tpu_custom_call.1} parent=11 // pred_fallthru
          _
      $region12: #{tpu_custom_call.1} parent=5 // pred_fallthru
        _
      %p178 = scmp.lt.s32.totalorder %s15, 2
      // Predicated region
      $region29: #{tpu_custom_call.1} parent=5 // pred_check
        %p179 = pneg %p178
      $region30: #{tpu_custom_call.1} parent=5 // pred_check_branch
        %181 = sbr.rel (%p179) target = $region32
      $region31: #{tpu_custom_call.1} parent=5 // pred_region
        // Predicated region
        $region33: #{tpu_custom_call.1} parent=31 // pred_check
          %p182 = pneg %p35
        $region34: #{tpu_custom_call.1} parent=31 // pred_check_branch
          %184 = sbr.rel (%p182) target = $region36
        $region35: #{tpu_custom_call.1} parent=31 // pred_region
          %s185 = smul.u32 2, %s15
          %p186 = scmp.lt.s32.totalorder %s185, 3
          %s187 = scalar_select %p186, %s185, 3
          %s188 = smul.addr %s187, 8
          %s189 = scalar_lea.vmem %s0, %s188
          %s190 = smul.u32 2, %s15
        $region36: #{tpu_custom_call.1} parent=31 // pred_fallthru
          _
      $region32: #{tpu_custom_call.1} parent=5 // pred_fallthru
        _
      %p191 = scmp.le.s32.totalorder 1, %s15
      %p192 = scmp.lt.s32.totalorder %s15, 3
      %p193 = pnand %p191, %p192
      %p194 = pneg %p193
      // Predicated region
      $region37: #{tpu_custom_call.1} parent=5 // pred_check
        _
      $region38: #{tpu_custom_call.1} parent=5 // pred_check_branch
        %196 = sbr.rel (%p193) target = $region40
      $region39: #{tpu_custom_call.1} parent=5 // pred_region
        %s197 = ssub.s32 %s15, 1
        %s198 = smul.u32 2, %s20
        %p199 = scmp.lt.s32.totalorder %s198, 3
        %s200 = scalar_select %p199, %s198, 3
        %s201 = smul.addr %s200, 8
        %s202 = scalar_lea.vmem %s0, %s201
        %p203 = pneg %p41
        %p204 = pneg %p38
        %p205 = pneg %p62
        %p206 = pneg %p59
        %p207 = pneg %p83
        %p208 = pneg %p80
        %p209 = pneg %p104
        %p210 = pneg %p101
        %p211 = pneg %p125
        %p212 = pneg %p122
        %p213 = pneg %p151
        %p214 = pneg %p148
        %s215 = sand.u32 %s138, 1
        %s216 = scalar_lea.sflag [#allocation4], %s215
        %s217 = sand.u32 %s138, 1
        %s218 = smul.addr %s217, 2
        %s219 = scalar_lea.vmem [#allocation3], %s218
        %s220 = smul.u32 2, %s20
        %p221 = scmp.lt.s32.totalorder %s220, 3
        %s222 = scalar_select %p221, %s220, 3
        %s223 = smul.addr %s222, 8
        %s224 = scalar_lea.vmem %s0, %s223
        %s225 = smul.u32 2, %s20
        %s226 = smul.u32 2, %s20
        %v227 = vld [vmem:[%s224] sm:$0xff]
        %v228 = vld [vmem:[%s224 + $0x8] sm:$0xff]
        %v229 = vld [vmem:[%s2] sm:$0xff]
        %v230 = vld [vmem:[%s2 + $0x8] sm:$0xff]
        %v231 = vld [vmem:[%s2 + $0x10] sm:$0xff]
        %v232 = vld [vmem:[%s2 + $0x18] sm:$0xff]
        %234 = vset.pattern.permute.xlu0 0
        %235 = vperm.xlu0 %234, %v229
        %v236 = vpop.permute.xlu0 %235
        %239 = vset.pattern.permute.xlu0 0
        %240 = vperm.xlu0 %239, %v230
        %v241 = vpop.permute.xlu0 %240
        %244 = vset.pattern.permute.xlu0 0
        %245 = vperm.xlu0 %244, %v231
        %v246 = vpop.permute.xlu0 %245
        %249 = vset.pattern.permute.xlu0 0
        %250 = vperm.xlu0 %249, %v232
        %v251 = vpop.permute.xlu0 %250
        %v253 = vld [vmem:[%s1] sm:$0xff]
        %v254 = vld [vmem:[%s1 + $0x8] sm:$0xff]
        %v255 = vld [vmem:[%s1 + $0x10] sm:$0xff]
        %v256 = vld [vmem:[%s1 + $0x18] sm:$0xff]
        %258 = vset.pattern.permute.xlu0 0
        %259 = vperm.xlu0 %258, %v253
        %v260 = vpop.permute.xlu0 %259
        %263 = vset.pattern.permute.xlu0 0
        %264 = vperm.xlu0 %263, %v254
        %v265 = vpop.permute.xlu0 %264
        %268 = vset.pattern.permute.xlu0 0
        %269 = vperm.xlu0 %268, %v255
        %v270 = vpop.permute.xlu0 %269
        %273 = vset.pattern.permute.xlu0 0
        %274 = vperm.xlu0 %273, %v256
        %v275 = vpop.permute.xlu0 %274
        %v277 = vlaneseq
        %v278 = vshrl.u32 %v277, 7
        %v279 = vsub.s32 0, %v278
        %v280 = vrot.slane %v227, %v279
        %v281 = vlaneseq
        %v282 = vshrl.u32 %v281, 7
        %v283 = vsub.s32 0, %v282
        %v284 = vrot.slane %v228, %v283
        %v285 = vmul.f32 %v260, %v280
        %v286 = vmul.f32 %v260, %v284
        %v287 = vmul.f32 %v265, %v280
        %v288 = vmul.f32 %v265, %v284
        %v289 = vmul.f32 %v270, %v280
        %v290 = vmul.f32 %v270, %v284
        %v291 = vmul.f32 %v275, %v280
        %v292 = vmul.f32 %v275, %v284
        %v293 = vadd.f32 %v236, %v285
        %v294 = vadd.f32 %v236, %v286
        %v295 = vadd.f32 %v241, %v287
        %v296 = vadd.f32 %v241, %v288
        %v297 = vadd.f32 %v246, %v289
        %v298 = vadd.f32 %v246, %v290
        %v299 = vadd.f32 %v251, %v291
        %v300 = vadd.f32 %v251, %v292
        %s301 = scalar_lea.vmem %s1, 32
        %v302 = vld [vmem:[%s301] sm:$0xff]
        %v303 = vld [vmem:[%s301 + $0x8] sm:$0xff]
        %v304 = vld [vmem:[%s301 + $0x10] sm:$0xff]
        %v305 = vld [vmem:[%s301 + $0x18] sm:$0xff]
        %307 = vset.pattern.permute.xlu0 0
        %308 = vperm.xlu0 %307, %v302
        %v309 = vpop.permute.xlu0 %308
        %312 = vset.pattern.permute.xlu0 0
        %313 = vperm.xlu0 %312, %v303
        %v314 = vpop.permute.xlu0 %313
        %317 = vset.pattern.permute.xlu0 0
        %318 = vperm.xlu0 %317, %v304
        %v319 = vpop.permute.xlu0 %318
        %322 = vset.pattern.permute.xlu0 0
        %323 = vperm.xlu0 %322, %v305
        %v324 = vpop.permute.xlu0 %323
        %v326 = vlaneseq
        %v327 = vshrl.u32 %v326, 7
        %v328 = vsub.s32 1, %v327
        %v329 = vrot.slane %v227, %v328
        %v330 = vlaneseq
        %v331 = vshrl.u32 %v330, 7
        %v332 = vsub.s32 1, %v331
        %v333 = vrot.slane %v228, %v332
        %v334 = vmul.f32 %v309, %v329
        %v335 = vmul.f32 %v309, %v333
        %v336 = vmul.f32 %v314, %v329
        %v337 = vmul.f32 %v314, %v333
        %v338 = vmul.f32 %v319, %v329
        %v339 = vmul.f32 %v319, %v333
        %v340 = vmul.f32 %v324, %v329
        %v341 = vmul.f32 %v324, %v333
        %v342 = vadd.f32 %v293, %v334
        %v343 = vadd.f32 %v294, %v335
        %v344 = vadd.f32 %v295, %v336
        %v345 = vadd.f32 %v296, %v337
        %v346 = vadd.f32 %v297, %v338
        %v347 = vadd.f32 %v298, %v339
        %v348 = vadd.f32 %v299, %v340
        %v349 = vadd.f32 %v300, %v341
        %s350 = scalar_lea.vmem %s1, 64
        %v351 = vld [vmem:[%s350] sm:$0xff]
        %v352 = vld [vmem:[%s350 + $0x8] sm:$0xff]
        %v353 = vld [vmem:[%s350 + $0x10] sm:$0xff]
        %v354 = vld [vmem:[%s350 + $0x18] sm:$0xff]
        %356 = vset.pattern.permute.xlu0 0
        %357 = vperm.xlu0 %356, %v351
        %v358 = vpop.permute.xlu0 %357
        %361 = vset.pattern.permute.xlu0 0
        %362 = vperm.xlu0 %361, %v352
        %v363 = vpop.permute.xlu0 %362
        %366 = vset.pattern.permute.xlu0 0
        %367 = vperm.xlu0 %366, %v353
        %v368 = vpop.permute.xlu0 %367
        %371 = vset.pattern.permute.xlu0 0
        %372 = vperm.xlu0 %371, %v354
        %v373 = vpop.permute.xlu0 %372
        %v375 = vlaneseq
        %v376 = vshrl.u32 %v375, 7
        %v377 = vsub.s32 2, %v376
        %v378 = vrot.slane %v227, %v377
        %v379 = vlaneseq
        %v380 = vshrl.u32 %v379, 7
        %v381 = vsub.s32 2, %v380
        %v382 = vrot.slane %v228, %v381
        %v383 = vmul.f32 %v358, %v378
        %v384 = vmul.f32 %v358, %v382
        %v385 = vmul.f32 %v363, %v378
        %v386 = vmul.f32 %v363, %v382
        %v387 = vmul.f32 %v368, %v378
        %v388 = vmul.f32 %v368, %v382
        %v389 = vmul.f32 %v373, %v378
        %v390 = vmul.f32 %v373, %v382
        %v391 = vadd.f32 %v342, %v383
        %v392 = vadd.f32 %v343, %v384
        %v393 = vadd.f32 %v344, %v385
        %v394 = vadd.f32 %v345, %v386
        %v395 = vadd.f32 %v346, %v387
        %v396 = vadd.f32 %v347, %v388
        %v397 = vadd.f32 %v348, %v389
        %v398 = vadd.f32 %v349, %v390
        %s399 = scalar_lea.vmem %s1, 96
        %v400 = vld [vmem:[%s399] sm:$0xff]
        %v401 = vld [vmem:[%s399 + $0x8] sm:$0xff]
        %v402 = vld [vmem:[%s399 + $0x10] sm:$0xff]
        %v403 = vld [vmem:[%s399 + $0x18] sm:$0xff]
        %405 = vset.pattern.permute.xlu0 0
        %406 = vperm.xlu0 %405, %v400
        %v407 = vpop.permute.xlu0 %406
        %410 = vset.pattern.permute.xlu0 0
        %411 = vperm.xlu0 %410, %v401
        %v412 = vpop.permute.xlu0 %411
        %415 = vset.pattern.permute.xlu0 0
        %416 = vperm.xlu0 %415, %v402
        %v417 = vpop.permute.xlu0 %416
        %420 = vset.pattern.permute.xlu0 0
        %421 = vperm.xlu0 %420, %v403
        %v422 = vpop.permute.xlu0 %421
        %v424 = vlaneseq
        %v425 = vshrl.u32 %v424, 7
        %v426 = vsub.s32 3, %v425
        %v427 = vrot.slane %v227, %v426
        %v428 = vlaneseq
        %v429 = vshrl.u32 %v428, 7
        %v430 = vsub.s32 3, %v429
        %v431 = vrot.slane %v228, %v430
        %v432 = vmul.f32 %v407, %v427
        %v433 = vmul.f32 %v407, %v431
        %v434 = vmul.f32 %v412, %v427
        %v435 = vmul.f32 %v412, %v431
        %v436 = vmul.f32 %v417, %v427
        %v437 = vmul.f32 %v417, %v431
        %v438 = vmul.f32 %v422, %v427
        %v439 = vmul.f32 %v422, %v431
        %v440 = vadd.f32 %v391, %v432
        %v441 = vadd.f32 %v392, %v433
        %v442 = vadd.f32 %v393, %v434
        %v443 = vadd.f32 %v394, %v435
        %v444 = vadd.f32 %v395, %v436
        %v445 = vadd.f32 %v396, %v437
        %v446 = vadd.f32 %v397, %v438
        %v447 = vadd.f32 %v398, %v439
        %s448 = scalar_lea.vmem %s1, 128
        %v449 = vld [vmem:[%s448] sm:$0xff]
        %v450 = vld [vmem:[%s448 + $0x8] sm:$0xff]
        %v451 = vld [vmem:[%s448 + $0x10] sm:$0xff]
        %v452 = vld [vmem:[%s448 + $0x18] sm:$0xff]
        %454 = vset.pattern.permute.xlu0 0
        %455 = vperm.xlu0 %454, %v449
        %v456 = vpop.permute.xlu0 %455
        %459 = vset.pattern.permute.xlu0 0
        %460 = vperm.xlu0 %459, %v450
        %v461 = vpop.permute.xlu0 %460
        %464 = vset.pattern.permute.xlu0 0
        %465 = vperm.xlu0 %464, %v451
        %v466 = vpop.permute.xlu0 %465
        %469 = vset.pattern.permute.xlu0 0
        %470 = vperm.xlu0 %469, %v452
        %v471 = vpop.permute.xlu0 %470
        %v473 = vlaneseq
        %v474 = vshrl.u32 %v473, 7
        %v475 = vsub.s32 4, %v474
        %v476 = vrot.slane %v227, %v475
        %v477 = vlaneseq
        %v478 = vshrl.u32 %v477, 7
        %v479 = vsub.s32 4, %v478
        %v480 = vrot.slane %v228, %v479
        %v481 = vmul.f32 %v456, %v476
        %v482 = vmul.f32 %v456, %v480
        %v483 = vmul.f32 %v461, %v476
        %v484 = vmul.f32 %v461, %v480
        %v485 = vmul.f32 %v466, %v476
        %v486 = vmul.f32 %v466, %v480
        %v487 = vmul.f32 %v471, %v476
        %v488 = vmul.f32 %v471, %v480
        %v489 = vadd.f32 %v440, %v481
        %v490 = vadd.f32 %v441, %v482
        %v491 = vadd.f32 %v442, %v483
        %v492 = vadd.f32 %v443, %v484
        %v493 = vadd.f32 %v444, %v485
        %v494 = vadd.f32 %v445, %v486
        %v495 = vadd.f32 %v446, %v487
        %v496 = vadd.f32 %v447, %v488
        %s497 = scalar_lea.vmem %s1, 160
        %v498 = vld [vmem:[%s497] sm:$0xff]
        %v499 = vld [vmem:[%s497 + $0x8] sm:$0xff]
        %v500 = vld [vmem:[%s497 + $0x10] sm:$0xff]
        %v501 = vld [vmem:[%s497 + $0x18] sm:$0xff]
        %503 = vset.pattern.permute.xlu0 0
        %504 = vperm.xlu0 %503, %v498
        %v505 = vpop.permute.xlu0 %504
        %508 = vset.pattern.permute.xlu0 0
        %509 = vperm.xlu0 %508, %v499
        %v510 = vpop.permute.xlu0 %509
        %513 = vset.pattern.permute.xlu0 0
        %514 = vperm.xlu0 %513, %v500
        %v515 = vpop.permute.xlu0 %514
        %518 = vset.pattern.permute.xlu0 0
        %519 = vperm.xlu0 %518, %v501
        %v520 = vpop.permute.xlu0 %519
        %v522 = vlaneseq
        %v523 = vshrl.u32 %v522, 7
        %v524 = vsub.s32 5, %v523
        %v525 = vrot.slane %v227, %v524
        %v526 = vlaneseq
        %v527 = vshrl.u32 %v526, 7
        %v528 = vsub.s32 5, %v527
        %v529 = vrot.slane %v228, %v528
        %v530 = vmul.f32 %v505, %v525
        %v531 = vmul.f32 %v505, %v529
        %v532 = vmul.f32 %v510, %v525
        %v533 = vmul.f32 %v510, %v529
        %v534 = vmul.f32 %v515, %v525
        %v535 = vmul.f32 %v515, %v529
        %v536 = vmul.f32 %v520, %v525
        %v537 = vmul.f32 %v520, %v529
        %v538 = vadd.f32 %v489, %v530
        %v539 = vadd.f32 %v490, %v531
        %v540 = vadd.f32 %v491, %v532
        %v541 = vadd.f32 %v492, %v533
        %v542 = vadd.f32 %v493, %v534
        %v543 = vadd.f32 %v494, %v535
        %v544 = vadd.f32 %v495, %v536
        %v545 = vadd.f32 %v496, %v537
        %s546 = scalar_lea.vmem %s1, 192
        %v547 = vld [vmem:[%s546] sm:$0xff]
        %v548 = vld [vmem:[%s546 + $0x8] sm:$0xff]
        %v549 = vld [vmem:[%s546 + $0x10] sm:$0xff]
        %v550 = vld [vmem:[%s546 + $0x18] sm:$0xff]
        %552 = vset.pattern.permute.xlu0 0
        %553 = vperm.xlu0 %552, %v547
        %v554 = vpop.permute.xlu0 %553
        %557 = vset.pattern.permute.xlu0 0
        %558 = vperm.xlu0 %557, %v548
        %v559 = vpop.permute.xlu0 %558
        %562 = vset.pattern.permute.xlu0 0
        %563 = vperm.xlu0 %562, %v549
        %v564 = vpop.permute.xlu0 %563
        %567 = vset.pattern.permute.xlu0 0
        %568 = vperm.xlu0 %567, %v550
        %v569 = vpop.permute.xlu0 %568
        %v571 = vlaneseq
        %v572 = vshrl.u32 %v571, 7
        %v573 = vsub.s32 6, %v572
        %v574 = vrot.slane %v227, %v573
        %v575 = vlaneseq
        %v576 = vshrl.u32 %v575, 7
        %v577 = vsub.s32 6, %v576
        %v578 = vrot.slane %v228, %v577
        %v579 = vmul.f32 %v554, %v574
        %v580 = vmul.f32 %v554, %v578
        %v581 = vmul.f32 %v559, %v574
        %v582 = vmul.f32 %v559, %v578
        %v583 = vmul.f32 %v564, %v574
        %v584 = vmul.f32 %v564, %v578
        %v585 = vmul.f32 %v569, %v574
        %v586 = vmul.f32 %v569, %v578
        %v587 = vadd.f32 %v538, %v579
        %v588 = vadd.f32 %v539, %v580
        %v589 = vadd.f32 %v540, %v581
        %v590 = vadd.f32 %v541, %v582
        %v591 = vadd.f32 %v542, %v583
        %v592 = vadd.f32 %v543, %v584
        %v593 = vadd.f32 %v544, %v585
        %v594 = vadd.f32 %v545, %v586
        %s595 = scalar_lea.vmem %s1, 224
        %v596 = vld [vmem:[%s595] sm:$0xff]
        %v597 = vld [vmem:[%s595 + $0x8] sm:$0xff]
        %v598 = vld [vmem:[%s595 + $0x10] sm:$0xff]
        %v599 = vld [vmem:[%s595 + $0x18] sm:$0xff]
        %601 = vset.pattern.permute.xlu0 0
        %602 = vperm.xlu0 %601, %v596
        %v603 = vpop.permute.xlu0 %602
        %606 = vset.pattern.permute.xlu0 0
        %607 = vperm.xlu0 %606, %v597
        %v608 = vpop.permute.xlu0 %607
        %611 = vset.pattern.permute.xlu0 0
        %612 = vperm.xlu0 %611, %v598
        %v613 = vpop.permute.xlu0 %612
        %616 = vset.pattern.permute.xlu0 0
        %617 = vperm.xlu0 %616, %v599
        %v618 = vpop.permute.xlu0 %617
        %v620 = vlaneseq
        %v621 = vshrl.u32 %v620, 7
        %v622 = vsub.s32 7, %v621
        %v623 = vrot.slane %v227, %v622
        %v624 = vlaneseq
        %v625 = vshrl.u32 %v624, 7
        %v626 = vsub.s32 7, %v625
        %v627 = vrot.slane %v228, %v626
        %v628 = vmul.f32 %v603, %v623
        %v629 = vmul.f32 %v603, %v627
        %v630 = vmul.f32 %v608, %v623
        %v631 = vmul.f32 %v608, %v627
        %v632 = vmul.f32 %v613, %v623
        %v633 = vmul.f32 %v613, %v627
        %v634 = vmul.f32 %v618, %v623
        %v635 = vmul.f32 %v618, %v627
        %v636 = vadd.f32 %v587, %v628
        %v637 = vadd.f32 %v588, %v629
        %v638 = vadd.f32 %v589, %v630
        %v639 = vadd.f32 %v590, %v631
        %v640 = vadd.f32 %v591, %v632
        %v641 = vadd.f32 %v592, %v633
        %v642 = vadd.f32 %v593, %v634
        %v643 = vadd.f32 %v594, %v635
        %vm644 = vcmp.gt.f32.partialorder %v636, 0.0
        %vm645 = vcmp.gt.f32.partialorder %v637, 0.0
        %vm646 = vcmp.gt.f32.partialorder %v638, 0.0
        %vm647 = vcmp.gt.f32.partialorder %v639, 0.0
        %vm648 = vcmp.gt.f32.partialorder %v640, 0.0
        %vm649 = vcmp.gt.f32.partialorder %v641, 0.0
        %vm650 = vcmp.gt.f32.partialorder %v642, 0.0
        %vm651 = vcmp.gt.f32.partialorder %v643, 0.0
        %v652 = vsel %vm644, 1.0, -1.0
        %v653 = vsel %vm645, 1.0, -1.0
        %v654 = vsel %vm646, 1.0, -1.0
        %v655 = vsel %vm647, 1.0, -1.0
        %v656 = vsel %vm648, 1.0, -1.0
        %v657 = vsel %vm649, 1.0, -1.0
        %v658 = vsel %vm650, 1.0, -1.0
        %v659 = vsel %vm651, 1.0, -1.0
        %v660 = vld [vmem:[%s3] sm:$0xff]
        %v661 = vld [vmem:[%s3 + $0x8] sm:$0xff]
        %v662 = vld [vmem:[%s3 + $0x10] sm:$0xff]
        %v663 = vld [vmem:[%s3 + $0x18] sm:$0xff]
        %665 = vset.pattern.permute.xlu0 0
        %666 = vperm.xlu0 %665, %v660
        %v667 = vpop.permute.xlu0 %666
        %670 = vset.pattern.permute.xlu0 0
        %671 = vperm.xlu0 %670, %v661
        %v672 = vpop.permute.xlu0 %671
        %675 = vset.pattern.permute.xlu0 0
        %676 = vperm.xlu0 %675, %v662
        %v677 = vpop.permute.xlu0 %676
        %680 = vset.pattern.permute.xlu0 0
        %681 = vperm.xlu0 %680, %v663
        %v682 = vpop.permute.xlu0 %681
        %v684 = vmul.f32 %v667, %v652
        %v685 = vmul.f32 %v667, %v653
        %v686 = vmul.f32 %v672, %v654
        %v687 = vmul.f32 %v672, %v655
        %v688 = vmul.f32 %v677, %v656
        %v689 = vmul.f32 %v677, %v657
        %v690 = vmul.f32 %v682, %v658
        %v691 = vmul.f32 %v682, %v659
        %v692 = vadd.f32 %v684, %v686
        %v693 = vadd.f32 %v692, %v688
        %v694 = vadd.f32 %v693, %v690
        %v695 = vrot.slane %v694, 4
        %v696 = vadd.f32 %v694, %v695
        %v697 = vrot.slane %v696, 2
        %v698 = vadd.f32 %v696, %v697
        %v699 = vrot.slane %v698, 1
        %v700 = vadd.f32 %v698, %v699
        %v701 = vadd.f32 %v685, %v687
        %v702 = vadd.f32 %v701, %v689
        %v703 = vadd.f32 %v702, %v691
        %v704 = vrot.slane %v703, 4
        %v705 = vadd.f32 %v703, %v704
        %v706 = vrot.slane %v705, 2
        %v707 = vadd.f32 %v705, %v706
        %v708 = vrot.slane %v707, 1
        %v709 = vadd.f32 %v707, %v708
        %s710 = sld [smem:[#allocation2]]
        %v711 = vstv %s710
        %v712 = vadd.f32 %v700, %v711
        %v713 = vadd.f32 %v709, %v711
        %v716 = vcombine.low %v712, %v713
        %v718 = vunpack.c.l.s4 1966171168
        %v719 = vunpack.c.0.s8 %v718
        %v720 = vlaneseq
        %v721 = vshrl.u32 %v720, 7
        %v722 = vsub.s32 %v719, %v721
        %v723 = vrot.slane %v716, %v722
        %v725 = vunpack.c.l.s4 1966171168
        %v726 = vunpack.c.0.s8 %v725
        %v727 = vlaneseq
        %v728 = vshrl.u32 %v727, 7
        %v729 = vsub.s32 %v726, %v728
        %v730 = vrot.slane %v723, %v729
        %v732 = vlaneseq
        %vm733 = vcmp.ge.s32.totalorder %v732, 0
        %vm734 = vcmp.lt.s32.totalorder %v732, 256
        %vm735 = vmand %vm733, %vm734
        %736 = vst.msk [vmem:[%s219] sm:$0x3] %vm735, %v730
        %s737 = sand.u32 %s138, 1
        %s738 = scalar_lea.sflag [#allocation4], %s737
        %s739 = sand.u32 %s138, 1
        %s740 = smul.addr %s739, 2
        %s741 = scalar_lea.vmem [#allocation3], %s740
        // Predicated region
        $region41: #{tpu_custom_call.1} parent=39 // pred_check
          %p742 = pneg %p148
        $region42: #{tpu_custom_call.1} parent=39 // pred_check_branch
          %744 = sbr.rel (%p742) target = $region44
        $region43: #{tpu_custom_call.1} parent=39 // pred_region
          %s745 = smul.u32 2, %s20
          %s747 = ssub.s32 32, 32
          %748 = vsyncadd %s738, %s747
          %s749 = smul.addr %s745, 16
          %s750 = scalar_lea.hbm %s5, %s749
          %s752 = sshll.u32 %s741, 4
          %s753 = int_to_ptr.vmem [resolvable:$true] %s752
          %755 = dma.vmem_to_hbm [thread:$0]  %s753, 32, %s750, %s738
        $region44: #{tpu_custom_call.1} parent=39 // pred_fallthru
          _
      $region40: #{tpu_custom_call.1} parent=5 // pred_fallthru
        _
      %p756 = scmp.le.s32.totalorder 2, %s15
      // Predicated region
      $region45: #{tpu_custom_call.1} parent=5 // pred_check
        %p757 = pneg %p756
      $region46: #{tpu_custom_call.1} parent=5 // pred_check_branch
        %759 = sbr.rel (%p757) target = $region48
      $region47: #{tpu_custom_call.1} parent=5 // pred_region
        %s760 = ssub.s32 %s15, 2
        // Predicated region
        $region49: #{tpu_custom_call.1} parent=47 // pred_check
          %p761 = pneg %p154
        $region50: #{tpu_custom_call.1} parent=47 // pred_check_branch
          %763 = sbr.rel (%p761) target = $region52
        $region51: #{tpu_custom_call.1} parent=47 // pred_region
          %s764 = sand.u32 %s139, 1
          %s765 = scalar_lea.sflag [#allocation4], %s764
          %s766 = sand.u32 %s139, 1
          %s767 = smul.addr %s766, 2
          %s768 = scalar_lea.vmem [#allocation3], %s767
          %769 = dma.done %s765, 32
        $region52: #{tpu_custom_call.1} parent=47 // pred_fallthru
          _
      $region48: #{tpu_custom_call.1} parent=5 // pred_fallthru
        _
    $region6: #{tpu_custom_call.1} parent=1 // loop_footer
      %s19 = sadd.s32 1, %s15
    $region7: #{tpu_custom_call.1} parent=1 // loop_footer_branch
      %14 = sbr.rel target = $region3
    $region8: #{tpu_custom_call.1} parent=1 // loop_exit
      _
    %770 = vsyncpa [#allocation4], 1
    %s771 = scalar_lea.sflag [#allocation4], 1
    %772 = vsyncpa %s771, 1

</llo_original>
